<compile_context>
chip_gen: v6e
topology: v6e:2x2x1
jax: 0.10.0
libtpu: 0.0.40
codegen_flags: <defaults>
</compile_context>

<pallas_src>
import functools

import jax
import jax.numpy as jnp
from jax.experimental import pallas as pl
from jax.experimental.pallas import tpu as pltpu


def _round_up(n, m):
    return ((n + m - 1) // m) * m


def _lstnet_kernel(x_ref, w_ref, b_ref, out_ref, *,
                   T, KD_pad, Hc, Hg, O_pad, r_wih, r_whh, r_wfc):
    """Fused conv(+ReLU) -> GRU -> linear for one batch tile.

    x_ref : (TB, T*KD_pad) f32   im2col'd input, each step chunk 128-lane padded
    w_ref : (R, WCOL)      mxu   packed [conv ; wih fused ; whh fused ; fc]
    b_ref : (8, WCOL)      f32   rows: 0=conv bias, 1=bih fused, 2=bhh fused, 3=fc bias
    out_ref: (TB, O_pad)
    """
    TB = x_ref.shape[0]
    H3 = 3 * Hg

    # Static, lane/sublane-aligned views into the packed weight slab.
    wc = w_ref[0:KD_pad, 0:Hc]                  # (KD_pad, Hc)
    wih = w_ref[r_wih:r_wih + Hc, 0:H3]         # (Hc, 3*Hg)  gate order r|z|n
    whh = w_ref[r_whh:r_whh + Hg, 0:H3]         # (Hg, 3*Hg)
    wfc = w_ref[r_wfc:r_wfc + Hg, 0:O_pad]      # (Hg, O_pad)
    mxu_dt = wc.dtype                           # bf16 by default, f32 optional

    bc = b_ref[0:1, 0:Hc]                       # (1, Hc)     f32
    bi = b_ref[1:2, 0:H3]                       # (1, 3*Hg)   fused bih
    bh = b_ref[2:3, 0:H3]                       # (1, 3*Hg)   fused bhh
    bfc = b_ref[3:4, 0:O_pad]                   # (1, O_pad)

    h = jnp.zeros((TB, Hg), jnp.float32)        # padded lanes provably stay zero
    # Static unroll: the module is only runnable with T == 1.
    # TODO(synk): for a hypothetical T > 1 switch to lax.fori_loop(..., unroll=True).
    for t in range(T):
        xt = x_ref[:, t * KD_pad:(t + 1) * KD_pad]          # lane-aligned view
        # ---- Conv2d(1, Hc, (K, D)) at step t as one matmul, bias + ReLU ----
        ct = jnp.maximum(
            jnp.dot(xt.astype(mxu_dt), wc,
                    preferred_element_type=jnp.float32) + bc, 0.0)   # (TB, Hc)
        # ---- GRU cell: two fused all-gate matmuls (was six per-gate dots) ----
        gi = jnp.dot(ct.astype(mxu_dt), wih,
                     preferred_element_type=jnp.float32) + bi        # (TB, 3*Hg)
        gh = jnp.dot(h.astype(mxu_dt), whh,
                     preferred_element_type=jnp.float32) + bh        # (TB, 3*Hg)
        r = jax.nn.sigmoid(gi[:, 0:Hg] + gh[:, 0:Hg])
        z = jax.nn.sigmoid(gi[:, Hg:2 * Hg] + gh[:, Hg:2 * Hg])
        n = jnp.tanh(gi[:, 2 * Hg:H3] + r * gh[:, 2 * Hg:H3])
        h = (1.0 - z) * n + z * h

    # r_out[-1] == final hidden state; dropout is identity at inference time.
    # TODO(synk): training-mode dropout (p=0.2) not implemented; inference only.
    out = jnp.dot(h.astype(mxu_dt), wfc, preferred_element_type=jnp.float32) + bfc
    out_ref[...] = out.astype(out_ref.dtype)


def init_params(key, input_dim, hidden_cnn, kernel_size, hidden_rnn, output_dim):
    """Deterministic synthetic parameters matching the PyTorch __init__ shapes."""
    ks = jax.random.split(key, 8)
    s = 0.1
    gru_in = hidden_cnn  # hidden_cnn * (window_size - kernel_size + 1) with W == K
    return {
        "wc":  jax.random.normal(ks[0], (hidden_cnn, kernel_size, input_dim), jnp.float32) * s,
        "bc":  jax.random.normal(ks[1], (hidden_cnn,), jnp.float32) * s,
        "wih": jax.random.normal(ks[2], (3 * hidden_rnn, gru_in), jnp.float32) * s,
        "whh": jax.random.normal(ks[3], (3 * hidden_rnn, hidden_rnn), jnp.float32) * s,
        "bih": jax.random.normal(ks[4], (3 * hidden_rnn,), jnp.float32) * s,
        "bhh": jax.random.normal(ks[5], (3 * hidden_rnn,), jnp.float32) * s,
        "wfc": jax.random.normal(ks[6], (output_dim, hidden_rnn), jnp.float32) * s,
        "bfc": jax.random.normal(ks[7], (output_dim,), jnp.float32) * s,
    }


def prepare_params(params, *, mxu_dtype=jnp.bfloat16):
    """One-time layout prep: fuse / transpose / pad / pack weights into two slabs.

    bf16 MXU operands are the default on every TPU generation (f32 accumulation;
    biases and all elementwise / transcendental math stay f32).  Pass
    mxu_dtype=jnp.float32 for bit-exact f32 matmuls.
    """
    Hc, K, D = params["wc"].shape
    Hr = params["whh"].shape[1]
    O = params["wfc"].shape[0]
    gru_in = params["wih"].shape[1]
    if gru_in != Hc:
        raise ValueError(
            "LSTNetClassifier.forward only runs with window_size == kernel_size "
            f"(GRU input size {gru_in} must equal hidden_cnn {Hc}).")

    KD = K * D
    KD_pad = _round_up(KD, 128)
    Hg = _round_up(Hr, 128)            # per-gate 128-lane-aligned output block
    H3 = 3 * Hg
    O_pad = _round_up(O, 128)
    WCOL = max(H3, O_pad, _round_up(Hc, 128))

    # ---- weight slab (MXU dtype): [conv ; wih fused ; whh fused ; fc] ----
    r_wih = KD_pad
    r_whh = r_wih + _round_up(Hc, 8)
    r_wfc = r_whh + Hg
    R = r_wfc + Hg

    w = jnp.zeros((R, WCOL), jnp.float32)
    w = w.at[0:KD, 0:Hc].set(params["wc"].reshape(Hc, KD).T)
    wih, whh = params["wih"], params["whh"]
    for g in range(3):                 # PyTorch gate order r, z, n
        w = w.at[r_wih:r_wih + Hc, g * Hg:g * Hg + Hr].set(wih[g * Hr:(g + 1) * Hr].T)
        w = w.at[r_whh:r_whh + Hr, g * Hg:g * Hg + Hr].set(whh[g * Hr:(g + 1) * Hr].T)
    w = w.at[r_wfc:r_wfc + Hr, 0:O].set(params["wfc"].T)
    w = w.astype(mxu_dtype)

    # ---- bias slab (f32): rows 0=conv, 1=bih fused, 2=bhh fused, 3=fc ----
    b = jnp.zeros((8, WCOL), jnp.float32)
    b = b.at[0, 0:Hc].set(params["bc"])
    for g in range(3):
        b = b.at[1, g * Hg:g * Hg + Hr].set(params["bih"][g * Hr:(g + 1) * Hr])
        b = b.at[2, g * Hg:g * Hg + Hr].set(params["bhh"][g * Hr:(g + 1) * Hr])
    b = b.at[3, 0:O].set(params["bfc"])

    meta = dict(kernel_size=K, input_dim=D, hidden_cnn=Hc, hidden_rnn=Hr,
                output_dim=O, KD=KD, KD_pad=KD_pad, Hg=Hg, O_pad=O_pad,
                r_wih=r_wih, r_whh=r_whh, r_wfc=r_wfc)
    return {"w": w, "b": b}, meta


def lstnet_forward(x, prep, meta, *, block_b=512, out_dtype=jnp.float32):
    """x: (B, W, D) f32.  Returns (B, output_dim) f32.

    block_b: target batch-tile size (multiple-of-8 enforced).  ~512 suits v5e;
    1024-2048 suit v6e/v7x.  At least 2 tiles are used whenever the batch
    allows, so the "parallel" grid axis shards across both v7x TensorCores.
    out_dtype=jnp.bfloat16 halves the HBM writeback if precision allows.
    """
    B, W, D = x.shape
    K = meta["kernel_size"]
    assert D == meta["input_dim"]
    T = W - K + 1
    KD, KD_pad = meta["KD"], meta["KD_pad"]
    Hc, Hg = meta["hidden_cnn"], meta["Hg"]
    O, O_pad = meta["output_dim"], meta["O_pad"]

    # im2col in the wrapper; each per-step chunk is padded to a 128-lane multiple
    # so the kernel's per-step slice is lane-aligned.  For the only runnable
    # config (W == K, T == 1, KD == 128 here) this is a pure reshape.
    chunks = []
    for t in range(T):
        c = x[:, t:t + K, :].reshape(B, KD)
        if KD_pad != KD:
            c = jnp.pad(c, ((0, 0), (0, KD_pad - KD)))
        chunks.append(c)
    x_col = chunks[0] if T == 1 else jnp.concatenate(chunks, axis=1)

    # Adaptive batch tiling: never pad to a full block_b multiple.  TB is a
    # multiple of 8; >= 2 tiles whenever possible (v7x megacore); residual
    # padding is at most a handful of rows.
    B_pad = _round_up(B, 8)
    n_tiles = max(2, pl.cdiv(B_pad, block_b))
    TB = _round_up(pl.cdiv(B_pad, n_tiles), 8)
    n_tiles = pl.cdiv(B_pad, TB)
    B_full = n_tiles * TB
    if B_full != B:
        x_col = jnp.pad(x_col, ((0, B_full - B), (0, 0)))

    kernel = functools.partial(
        _lstnet_kernel, T=T, KD_pad=KD_pad, Hc=Hc, Hg=Hg, O_pad=O_pad,
        r_wih=meta["r_wih"], r_whh=meta["r_whh"], r_wfc=meta["r_wfc"])

    w, b = prep["w"], prep["b"]
    out = pl.pallas_call(
        kernel,
        out_shape=jax.ShapeDtypeStruct((B_full, O_pad), out_dtype),
        grid=(n_tiles,),
        in_specs=[
            pl.BlockSpec((TB, T * KD_pad), lambda i: (i, 0)),  # batch-tiled x
            pl.BlockSpec(w.shape, lambda i: (0, 0)),           # resident weight slab
            pl.BlockSpec(b.shape, lambda i: (0, 0)),           # resident bias slab
        ],
        out_specs=pl.BlockSpec((TB, O_pad), lambda i: (i, 0)),
        compiler_params=pltpu.CompilerParams(
            dimension_semantics=("parallel",)),   # shard batch tiles across TCs (v7x)
    )(x_col, w, b)
    return out[:B, :O].astype(jnp.float32)


def ref_forward(x, p, kernel_size):
    """Pure-JAX f32 reference of the PyTorch forward (inference mode)."""
    B, W, D = x.shape
    K = kernel_size
    T = W - K + 1
    Hc = p["wc"].shape[0]
    Hr = p["whh"].shape[1]
    wc_flat = p["wc"].reshape(Hc, K * D)
    c = [jax.nn.relu(x[:, t:t + K, :].reshape(B, K * D) @ wc_flat.T + p["bc"])
         for t in range(T)]
    h = jnp.zeros((B, Hr), jnp.float32)
    for t in range(T):
        gi = c[t] @ p["wih"].T + p["bih"]
        gh = h @ p["whh"].T + p["bhh"]
        r = jax.nn.sigmoid(gi[:, :Hr] + gh[:, :Hr])
        z = jax.nn.sigmoid(gi[:, Hr:2 * Hr] + gh[:, Hr:2 * Hr])
        n = jnp.tanh(gi[:, 2 * Hr:] + r * gh[:, 2 * Hr:])
        h = (1.0 - z) * n + z * h
    return h @ p["wfc"].T + p["bfc"]


if __name__ == "__main__":
    # Small shapes consistent with the module (window_size == kernel_size required).
    batch = 4
    input_dim = 16
    window_size = 8
    kernel_size = 8
    hidden_cnn = 16
    hidden_rnn = 32
    output_dim = 8

    key = jax.random.PRNGKey(0)
    kx, kp = jax.random.split(key)
    x = jax.random.normal(kx, (batch, window_size, input_dim), jnp.float32)
    params = init_params(kp, input_dim, hidden_cnn, kernel_size, hidden_rnn, output_dim)

    # One-time parameter layout prep (hoisted out of the forward path).
    # Default: bf16 MXU operands with f32 accumulation on all TPU generations.
    prep, meta = prepare_params(params)

    fwd = jax.jit(lambda a: lstnet_forward(a, prep, meta))
    out = jax.block_until_ready(fwd(x))

    expected = ref_forward(x, params, kernel_size)
    assert out.shape == (batch, output_dim)
    # Tolerance accounts for bf16 MXU operands (recurrence / accumulation stay f32).
    assert jnp.allclose(out, expected, atol=5e-2, rtol=5e-2), "mismatch vs reference"
    print("KERNEL_OK")
</pallas_src>

<mosaic_0001>
module attributes {stable_mosaic.version = 11 : i64} {
  func.func @_lstnet_kernel(%arg0: i32, %arg1: memref<8x128xf32, #tpu.memory_space<vmem>>, %arg2: memref<400x384xbf16, #tpu.memory_space<vmem>>, %arg3: memref<8x384xf32, #tpu.memory_space<vmem>>, %arg4: memref<8x128xf32, #tpu.memory_space<vmem>>) attributes {dimension_semantics = [#tpu.dimension_semantics<parallel>], iteration_bounds = array<i64: 1>, scalar_prefetch = 0 : i64, scratch_operands = 0 : i64, tpu.core_type = #tpu.core_type<tc>, window_params = [{transform_indices = @transform_0, window_bounds = array<i64: 8, 128>}, {pipeline_mode = #tpu.pipeline_mode<synchronous>, transform_indices = @transform_1, window_bounds = array<i64: 400, 384>}, {pipeline_mode = #tpu.pipeline_mode<synchronous>, transform_indices = @transform_2, window_bounds = array<i64: 8, 384>}, {transform_indices = @transform_3, window_bounds = array<i64: 8, 128>}]} {
    %c0 = arith.constant 0 : index
    %c0_0 = arith.constant 0 : index
    %0 = vector.load %arg2[%c0, %c0_0] : memref<400x384xbf16, #tpu.memory_space<vmem>>, vector<128x16xbf16>
    %c128 = arith.constant 128 : index
    %c0_1 = arith.constant 0 : index
    %1 = vector.load %arg2[%c128, %c0_1] : memref<400x384xbf16, #tpu.memory_space<vmem>>, vector<16x384xbf16>
    %c144 = arith.constant 144 : index
    %c0_2 = arith.constant 0 : index
    %2 = vector.load %arg2[%c144, %c0_2] : memref<400x384xbf16, #tpu.memory_space<vmem>>, vector<128x384xbf16>
    %c272 = arith.constant 272 : index
    %c0_3 = arith.constant 0 : index
    %3 = vector.load %arg2[%c272, %c0_3] : memref<400x384xbf16, #tpu.memory_space<vmem>>, vector<128x128xbf16>
    %c0_4 = arith.constant 0 : index
    %c0_5 = arith.constant 0 : index
    %4 = vector.load %arg3[%c0_4, %c0_5] : memref<8x384xf32, #tpu.memory_space<vmem>>, vector<1x16xf32>
    %c1 = arith.constant 1 : index
    %c0_6 = arith.constant 0 : index
    %5 = vector.load %arg3[%c1, %c0_6] : memref<8x384xf32, #tpu.memory_space<vmem>>, vector<1x384xf32>
    %c2 = arith.constant 2 : index
    %c0_7 = arith.constant 0 : index
    %6 = vector.load %arg3[%c2, %c0_7] : memref<8x384xf32, #tpu.memory_space<vmem>>, vector<1x384xf32>
    %c3 = arith.constant 3 : index
    %c0_8 = arith.constant 0 : index
    %7 = vector.load %arg3[%c3, %c0_8] : memref<8x384xf32, #tpu.memory_space<vmem>>, vector<1x128xf32>
    %cst = arith.constant 0.000000e+00 : f32
    %8 = vector.broadcast %cst : f32 to vector<8x128xf32>
    %c0_9 = arith.constant 0 : index
    %c0_10 = arith.constant 0 : index
    %9 = vector.load %arg1[%c0_9, %c0_10] : memref<8x128xf32, #tpu.memory_space<vmem>>, vector<8x128xf32>
    %10 = arith.truncf %9 : vector<8x128xf32> to vector<8x128xbf16>
    %cst_11 = arith.constant dense<0.000000e+00> : vector<8x16xf32>
    %11 = tpu.matmul %10, %0, %cst_11 {dimension_numbers = #tpu.dot_dimension_numbers<[1], [0], [0], [1], [0, 0, 1, 1], [], []>} : vector<8x128xbf16>, vector<128x16xbf16>, vector<8x16xf32> -> vector<8x16xf32>
    %12 = vector.broadcast %4 : vector<1x16xf32> to vector<8x16xf32>
    %13 = arith.addf %11, %12 : vector<8x16xf32>
    %cst_12 = arith.constant 0.000000e+00 : f32
    %14 = vector.broadcast %cst_12 : f32 to vector<8x16xf32>
    %15 = arith.maximumf %13, %14 : vector<8x16xf32>
    %16 = arith.truncf %15 : vector<8x16xf32> to vector<8x16xbf16>
    %cst_13 = arith.constant dense<0.000000e+00> : vector<8x384xf32>
    %17 = tpu.matmul %16, %1, %cst_13 {dimension_numbers = #tpu.dot_dimension_numbers<[1], [0], [0], [1], [0, 0, 1, 1], [], []>} : vector<8x16xbf16>, vector<16x384xbf16>, vector<8x384xf32> -> vector<8x384xf32>
    %18 = vector.broadcast %5 : vector<1x384xf32> to vector<8x384xf32>
    %19 = arith.addf %17, %18 : vector<8x384xf32>
    %20 = arith.truncf %8 : vector<8x128xf32> to vector<8x128xbf16>
    %cst_14 = arith.constant dense<0.000000e+00> : vector<8x384xf32>
    %21 = tpu.matmul %20, %2, %cst_14 {dimension_numbers = #tpu.dot_dimension_numbers<[1], [0], [0], [1], [0, 0, 1, 1], [], []>} : vector<8x128xbf16>, vector<128x384xbf16>, vector<8x384xf32> -> vector<8x384xf32>
    %22 = vector.broadcast %6 : vector<1x384xf32> to vector<8x384xf32>
    %23 = arith.addf %21, %22 : vector<8x384xf32>
    %24 = vector.extract_strided_slice %19 {offsets = [0, 0], sizes = [8, 128], strides = [1, 1]} : vector<8x384xf32> to vector<8x128xf32>
    %25 = vector.extract_strided_slice %23 {offsets = [0, 0], sizes = [8, 128], strides = [1, 1]} : vector<8x384xf32> to vector<8x128xf32>
    %26 = arith.addf %24, %25 : vector<8x128xf32>
    %27 = arith.negf %26 : vector<8x128xf32>
    %28 = math.exp %27 : vector<8x128xf32>
    %cst_15 = arith.constant 1.000000e+00 : f32
    %29 = vector.broadcast %cst_15 : f32 to vector<8x128xf32>
    %30 = arith.addf %29, %28 : vector<8x128xf32>
    %31 = arith.divf %29, %30 : vector<8x128xf32>
    %32 = vector.extract_strided_slice %19 {offsets = [0, 128], sizes = [8, 128], strides = [1, 1]} : vector<8x384xf32> to vector<8x128xf32>
    %33 = vector.extract_strided_slice %23 {offsets = [0, 128], sizes = [8, 128], strides = [1, 1]} : vector<8x384xf32> to vector<8x128xf32>
    %34 = arith.addf %32, %33 : vector<8x128xf32>
    %35 = arith.negf %34 : vector<8x128xf32>
    %36 = math.exp %35 : vector<8x128xf32>
    %cst_16 = arith.constant 1.000000e+00 : f32
    %37 = vector.broadcast %cst_16 : f32 to vector<8x128xf32>
    %38 = arith.addf %37, %36 : vector<8x128xf32>
    %39 = arith.divf %37, %38 : vector<8x128xf32>
    %40 = vector.extract_strided_slice %19 {offsets = [0, 256], sizes = [8, 128], strides = [1, 1]} : vector<8x384xf32> to vector<8x128xf32>
    %41 = vector.extract_strided_slice %23 {offsets = [0, 256], sizes = [8, 128], strides = [1, 1]} : vector<8x384xf32> to vector<8x128xf32>
    %42 = arith.mulf %31, %41 : vector<8x128xf32>
    %43 = arith.addf %40, %42 : vector<8x128xf32>
    %44 = math.tanh %43 : vector<8x128xf32>
    %cst_17 = arith.constant 1.000000e+00 : f32
    %45 = vector.broadcast %cst_17 : f32 to vector<8x128xf32>
    %46 = arith.subf %45, %39 : vector<8x128xf32>
    %47 = arith.mulf %46, %44 : vector<8x128xf32>
    %48 = arith.mulf %39, %8 : vector<8x128xf32>
    %49 = arith.addf %47, %48 : vector<8x128xf32>
    %50 = arith.truncf %49 : vector<8x128xf32> to vector<8x128xbf16>
    %cst_18 = arith.constant dense<0.000000e+00> : vector<8x128xf32>
    %51 = tpu.matmul %50, %3, %cst_18 {dimension_numbers = #tpu.dot_dimension_numbers<[1], [0], [0], [1], [0, 0, 1, 1], [], []>} : vector<8x128xbf16>, vector<128x128xbf16>, vector<8x128xf32> -> vector<8x128xf32>
    %52 = vector.broadcast %7 : vector<1x128xf32> to vector<8x128xf32>
    %53 = arith.addf %51, %52 : vector<8x128xf32>
    %c0_19 = arith.constant 0 : index
    %c0_20 = arith.constant 0 : index
    %54 = vector.load %arg4[%c0_19, %c0_20] : memref<8x128xf32, #tpu.memory_space<vmem>>, vector<8x128xf32>
    tpu.vector_store %arg4[%c0_19, %c0_20], %53 {strides = array<i32>} : memref<8x128xf32, #tpu.memory_space<vmem>>, vector<8x128xf32>,
    return
  }
  func.func @transform_0(%arg0: i32) -> (i32, i32) {
    %c0_i32 = arith.constant 0 : i32
    %c0_i32_0 = arith.constant 0 : i32
    return %arg0, %c0_i32 : i32, i32
  }
  func.func @transform_1(%arg0: i32) -> (i32, i32) {
    %c0_i32 = arith.constant 0 : i32
    %c0_i32_0 = arith.constant 0 : i32
    %c0_i32_1 = arith.constant 0 : i32
    return %c0_i32, %c0_i32_0 : i32, i32
  }
  func.func @transform_2(%arg0: i32) -> (i32, i32) {
    %c0_i32 = arith.constant 0 : i32
    %c0_i32_0 = arith.constant 0 : i32
    %c0_i32_1 = arith.constant 0 : i32
    return %c0_i32, %c0_i32_0 : i32, i32
  }
  func.func @transform_3(%arg0: i32) -> (i32, i32) {
    %c0_i32 = arith.constant 0 : i32
    %c0_i32_0 = arith.constant 0 : i32
    return %arg0, %c0_i32 : i32, i32
  }
}

</mosaic_0001>

<llo_original>
// kernel: _lambda_.1
$region0: #{_lambda_.1}
  #allocation0 [shape = 'u32[]', space=smem, size = 0x4, offset = 0x4, fixed_abs, tag = 'smem constant byte address 0x4 - core index']
  #allocation1 [shape = 'u32[144,128]{1,0:T(1,128)}', space=vmem, size = 0x12000, scoped, tag = 'internal scratch']
  %s0 = inlined_call_operand.vmem [shape: f32[8,128], index: 0, kind: input, shape index: {}]
  %s1 = inlined_call_operand.hbm [shape: bf16[400,384], index: 1, kind: input, shape index: {}]
  %s2 = inlined_call_operand.vmem [shape: f32[8,384], index: 2, kind: input, shape index: {}]
  %s3 = inlined_call_operand.vmem [shape: f32[8,128], index: 3, kind: output, shape index: {}]
  %s4 = sld [smem:[#allocation0]]
  $region26: #{_lambda_.1} parent=0
    _
  %s6 = ssub.s32 1, %s4
  %s7 = scalar_select 0, %s6, %s4
  $region1: #{_lambda_.1} parent=0
    #allocation2 [shape = 'u8[307200]{0}', space=vmem, size = 0x4b000, scoped, tag = 'input window, operand 1, single buffered']
    #allocation3 [shape = 's32[1]{0}', space=sflag, size = 0x4, scoped, tag = 'scoped memory for _lambda_.1']
    %8 = vsyncpa [#allocation3], 0
    // Predicated region
    $region2: #{_lambda_.1} parent=1 // pred_check
      _
    $region3: #{_lambda_.1} parent=1 // pred_check_branch
      %10 = sbr.rel (0) target = $region5
    $region4: #{_lambda_.1} parent=1 // pred_region
      _
    $region5: #{_lambda_.1} parent=1 // pred_fallthru
      _
    // Predicated region
    $region6: #{_lambda_.1} parent=1 // pred_check
      _
    $region7: #{_lambda_.1} parent=1 // pred_check_branch
      %12 = sbr.rel (0) target = $region9
    $region8: #{_lambda_.1} parent=1 // pred_region
      %s14 = ssub.s32 9600, 9600
      %15 = vsyncadd [#allocation3], %s14
      %s16 = sshll.u32 [#allocation2], 4
      %s17 = int_to_ptr.vmem [resolvable:$true] %s16
      %22 = dma.hbm_to_vmem [thread:$0]  %s1, 9600, %s17, [#allocation3], 192, 192, 12
    $region9: #{_lambda_.1} parent=1 // pred_fallthru
      _
    // Predicated region
    $region10: #{_lambda_.1} parent=1 // pred_check
      _
    $region11: #{_lambda_.1} parent=1 // pred_check_branch
      %24 = sbr.rel (0) target = $region13
    $region12: #{_lambda_.1} parent=1 // pred_region
      _
    $region13: #{_lambda_.1} parent=1 // pred_fallthru
      _
    // Predicated region
    $region14: #{_lambda_.1} parent=1 // pred_check
      _
    $region15: #{_lambda_.1} parent=1 // pred_check_branch
      %26 = sbr.rel (0) target = $region17
    $region16: #{_lambda_.1} parent=1 // pred_region
      %27 = dma.done [#allocation3], 9600
    $region17: #{_lambda_.1} parent=1 // pred_fallthru
      _
    %v29 = vld [vmem:[#allocation2] sm:$0xf]
    %v30 = vld [vmem:[#allocation2 + $0xc] sm:$0xf]
    %v31 = vld [vmem:[#allocation2 + $0x18] sm:$0xf]
    %v32 = vld [vmem:[#allocation2 + $0x24] sm:$0xf]
    %v33 = vld [vmem:[#allocation2 + $0x30] sm:$0xf]
    %v34 = vld [vmem:[#allocation2 + $0x3c] sm:$0xf]
    %v35 = vld [vmem:[#allocation2 + $0x48] sm:$0xf]
    %v36 = vld [vmem:[#allocation2 + $0x54] sm:$0xf]
    %v37 = vld [vmem:[#allocation2 + $0x60] sm:$0xf]
    %v38 = vld [vmem:[#allocation2 + $0x6c] sm:$0xf]
    %v39 = vld [vmem:[#allocation2 + $0x78] sm:$0xf]
    %v40 = vld [vmem:[#allocation2 + $0x84] sm:$0xf]
    %v41 = vld [vmem:[#allocation2 + $0x90] sm:$0xf]
    %v42 = vld [vmem:[#allocation2 + $0x9c] sm:$0xf]
    %v43 = vld [vmem:[#allocation2 + $0xa8] sm:$0xf]
    %v44 = vld [vmem:[#allocation2 + $0xb4] sm:$0xf]
    %v45 = vld [vmem:[#allocation2 + $0xc0] sm:$0xff]
    %v46 = vld [vmem:[#allocation2 + $0xc8] sm:$0xf]
    %v47 = vld [vmem:[#allocation2 + $0xcc] sm:$0xff]
    %v48 = vld [vmem:[#allocation2 + $0xd4] sm:$0xf]
    %v49 = vld [vmem:[#allocation2 + $0xd8] sm:$0xff]
    %v50 = vld [vmem:[#allocation2 + $0xe0] sm:$0xf]
    %v51 = vld [vmem:[#allocation2 + $0xe4] sm:$0xff]
    %v52 = vld [vmem:[#allocation2 + $0xec] sm:$0xf]
    %v53 = vld [vmem:[#allocation2 + $0xf0] sm:$0xff]
    %v54 = vld [vmem:[#allocation2 + $0xf8] sm:$0xf]
    %v55 = vld [vmem:[#allocation2 + $0xfc] sm:$0xff]
    %v56 = vld [vmem:[#allocation2 + $0x104] sm:$0xf]
    %v57 = vld [vmem:[#allocation2 + $0x108] sm:$0xff]
    %v58 = vld [vmem:[#allocation2 + $0x110] sm:$0xf]
    %v59 = vld [vmem:[#allocation2 + $0x114] sm:$0xff]
    %v60 = vld [vmem:[#allocation2 + $0x11c] sm:$0xf]
    %v61 = vld [vmem:[#allocation2 + $0x120] sm:$0xff]
    %v62 = vld [vmem:[#allocation2 + $0x128] sm:$0xf]
    %v63 = vld [vmem:[#allocation2 + $0x12c] sm:$0xff]
    %v64 = vld [vmem:[#allocation2 + $0x134] sm:$0xf]
    %v65 = vld [vmem:[#allocation2 + $0x138] sm:$0xff]
    %v66 = vld [vmem:[#allocation2 + $0x140] sm:$0xf]
    %v67 = vld [vmem:[#allocation2 + $0x144] sm:$0xff]
    %v68 = vld [vmem:[#allocation2 + $0x14c] sm:$0xf]
    %v69 = vld [vmem:[#allocation2 + $0x150] sm:$0xff]
    %v70 = vld [vmem:[#allocation2 + $0x158] sm:$0xf]
    %v71 = vld [vmem:[#allocation2 + $0x15c] sm:$0xff]
    %v72 = vld [vmem:[#allocation2 + $0x164] sm:$0xf]
    %v73 = vld [vmem:[#allocation2 + $0x168] sm:$0xff]
    %v74 = vld [vmem:[#allocation2 + $0x170] sm:$0xf]
    %v75 = vld [vmem:[#allocation2 + $0x174] sm:$0xff]
    %v76 = vld [vmem:[#allocation2 + $0x17c] sm:$0xf]
    %v77 = vld [vmem:[#allocation2 + $0x180] sm:$0xff]
    %v78 = vld [vmem:[#allocation2 + $0x188] sm:$0xf]
    %v79 = vld [vmem:[#allocation2 + $0x18c] sm:$0xff]
    %v80 = vld [vmem:[#allocation2 + $0x194] sm:$0xf]
    %v81 = vld [vmem:[#allocation2 + $0x198] sm:$0xf]
    %v82 = vld [vmem:[#allocation2 + $0x1a4] sm:$0xf]
    %v83 = vld [vmem:[#allocation2 + $0x1b0] sm:$0xf]
    %v84 = vld [vmem:[#allocation2 + $0x1bc] sm:$0xf]
    %v85 = vld [vmem:[#allocation2 + $0x1c8] sm:$0xf]
    %v86 = vld [vmem:[#allocation2 + $0x1d4] sm:$0xf]
    %v87 = vld [vmem:[#allocation2 + $0x1e0] sm:$0xf]
    %v88 = vld [vmem:[#allocation2 + $0x1ec] sm:$0xf]
    %v89 = vld [vmem:[#allocation2 + $0x1f8] sm:$0xf]
    %v90 = vld [vmem:[#allocation2 + $0x204] sm:$0xf]
    %v91 = vld [vmem:[#allocation2 + $0x210] sm:$0xf]
    %v92 = vld [vmem:[#allocation2 + $0x21c] sm:$0xf]
    %v93 = vld [vmem:[#allocation2 + $0x228] sm:$0xf]
    %v94 = vld [vmem:[#allocation2 + $0x234] sm:$0xf]
    %v95 = vld [vmem:[#allocation2 + $0x240] sm:$0xf]
    %v96 = vld [vmem:[#allocation2 + $0x24c] sm:$0xf]
    %v97 = vld [vmem:[%s2] ss:$0 sm:$0xff]
    %s98 = scalar_lea.vmem %s2, 1
    %v99 = vld [vmem:[%s98] ss:$8 sm:$0x7]
    %s100 = scalar_lea.vmem %s2, 2
    %v101 = vld [vmem:[%s100] ss:$8 sm:$0x7]
    %v102 = vld [vmem:[%s2 + $0x3] ss:$0 sm:$0xff]
    %v103 = vld [vmem:[%s0] sm:$0xff]
    %v104 = vpack.c.bf16 %v103, %v103
    %v121 = vunpack.c.l.b16 %v29
    %v122 = vunpack.c.l.b16 %v30
    %v123 = vunpack.c.l.b16 %v31
    %v124 = vunpack.c.l.b16 %v32
    %v125 = vunpack.c.l.b16 %v33
    %v126 = vunpack.c.l.b16 %v34
    %v127 = vunpack.c.l.b16 %v35
    %v128 = vunpack.c.l.b16 %v36
    %v129 = vunpack.c.l.b16 %v37
    %v130 = vunpack.c.l.b16 %v38
    %v131 = vunpack.c.l.b16 %v39
    %v132 = vunpack.c.l.b16 %v40
    %v133 = vunpack.c.l.b16 %v41
    %v134 = vunpack.c.l.b16 %v42
    %v135 = vunpack.c.l.b16 %v43
    %v136 = vunpack.c.l.b16 %v44
    %v137 = vpack.c.b16 %v122, %v121
    %v138 = vpack.c.b16 %v124, %v123
    %v139 = vpack.c.b16 %v126, %v125
    %v140 = vpack.c.b16 %v128, %v127
    %v141 = vpack.c.b16 %v130, %v129
    %v142 = vpack.c.b16 %v132, %v131
    %v143 = vpack.c.b16 %v134, %v133
    %v144 = vpack.c.b16 %v136, %v135
    %153 = vmatprep.subr.bf16.mxu0 0
    %154 = vmatpush1.bf16.msra.mxu0 %v144
    %155 = vmatprep.subr.bf16.mxu0 0
    %156 = vmatpush1.bf16.msra.mxu0 %v143
    %157 = vmatprep.subr.bf16.mxu0 0
    %158 = vmatpush1.bf16.msra.mxu0 %v142
    %159 = vmatprep.subr.bf16.mxu0 0
    %160 = vmatpush1.bf16.msra.mxu0 %v141
    %161 = vmatprep.subr.bf16.mxu0 0
    %162 = vmatpush1.bf16.msra.mxu0 %v140
    %163 = vmatprep.subr.bf16.mxu0 0
    %164 = vmatpush1.bf16.msra.mxu0 %v139
    %165 = vmatprep.subr.bf16.mxu0 0
    %166 = vmatpush1.bf16.msra.mxu0 %v138
    %167 = vmatprep.subr.bf16.mxu0 0
    %168 = vmatpush1.bf16.msra.mxu0 %v137
    %169 = vmatprep.subr.bf16.mxu0 0
    %170 = vmatpush2.bf16.msra.mxu0 0
    %171 = vmatprep.subr.bf16.mxu0 0
    %172 = vmatpush2.bf16.msra.mxu0 0
    %173 = vmatprep.subr.bf16.mxu0 0
    %174 = vmatpush2.bf16.msra.mxu0 0
    %175 = vmatprep.subr.bf16.mxu0 0
    %176 = vmatpush2.bf16.msra.mxu0 0
    %177 = vmatprep.subr.bf16.mxu0 0
    %178 = vmatpush2.bf16.msra.mxu0 0
    %179 = vmatprep.subr.bf16.mxu0 0
    %180 = vmatpush2.bf16.msra.mxu0 0
    %181 = vmatprep.subr.bf16.mxu0 0
    %182 = vmatpush2.bf16.msra.mxu0 0
    %183 = vmatprep.subr.bf16.mxu0 0
    %184 = vmatpush2.bf16.msra.mxu0 0
    %185 = vmatprep.mubr.bf16.mxu0 0
    %186 = vmatmul.mubr.bf16.gmra.mxu0 %v104
    %v187 = vpop.f32.mrf.mxu0
    %v188 = vadd.f32 %v97, %v187
    %v189 = vpop.f32.mrf.mxu0
    %v190 = vpop.f32.mrf.mxu0
    %v191 = vpop.f32.mrf.mxu0
    %192 = vdwg.mxu0
    %v193 = vmax.f32 %v188, 0.0
    %v194 = vpack.c.bf16 %v193, %v193
    %v196 = vlaneseq
    %v197 = vshrl.u32 %v196, 7
    %v198 = vsub.s32 0, %v197
    %v199 = vrot.slane %v99, %v198
    %v200 = vlaneseq
    %v201 = vshrl.u32 %v200, 7
    %v202 = vsub.s32 1, %v201
    %v203 = vrot.slane %v99, %v202
    %v204 = vlaneseq
    %v205 = vshrl.u32 %v204, 7
    %v206 = vsub.s32 2, %v205
    %v207 = vrot.slane %v99, %v206
    %v215 = vunpack.c.l.b16 %v45
    %v216 = vunpack.c.h.b16 %v45
    %v217 = vunpack.c.l.b16 %v46
    %v218 = vunpack.c.l.b16 %v47
    %v219 = vunpack.c.h.b16 %v47
    %v220 = vunpack.c.l.b16 %v48
    %v221 = vpack.c.b16 %v218, %v215
    %v222 = vpack.c.b16 %v219, %v216
    %v223 = vpack.c.b16 %v220, %v217
    %vm227 = vcmask 130048
    %v229 = vsel %vm227, %v194, 0
    %231 = vmatprep.subr.bf16.mxu0 0
    %232 = vmatpush1.bf16.msra.mxu0 0
    %233 = vmatprep.subr.bf16.mxu0 0
    %234 = vmatpush1.bf16.msra.mxu0 0
    %235 = vmatprep.subr.bf16.mxu0 0
    %236 = vmatpush1.bf16.msra.mxu0 0
    %237 = vmatprep.subr.bf16.mxu0 0
    %238 = vmatpush1.bf16.msra.mxu0 0
    %239 = vmatprep.subr.bf16.mxu0 0
    %240 = vmatpush1.bf16.msra.mxu0 0
    %241 = vmatprep.subr.bf16.mxu0 0
    %242 = vmatpush1.bf16.msra.mxu0 0
    %243 = vmatprep.subr.bf16.mxu0 0
    %244 = vmatpush1.bf16.msra.mxu0 0
    %245 = vmatprep.subr.bf16.mxu0 %v222
    %246 = vmatpush1.bf16.msra.mxu0 %v221
    %247 = vmatprep.subr.bf16.mxu0 0
    %248 = vmatpush2.bf16.msra.mxu0 0
    %249 = vmatprep.subr.bf16.mxu0 0
    %250 = vmatpush2.bf16.msra.mxu0 0
    %251 = vmatprep.subr.bf16.mxu0 0
    %252 = vmatpush2.bf16.msra.mxu0 0
    %253 = vmatprep.subr.bf16.mxu0 0
    %254 = vmatpush2.bf16.msra.mxu0 0
    %255 = vmatprep.subr.bf16.mxu0 0
    %256 = vmatpush2.bf16.msra.mxu0 0
    %257 = vmatprep.subr.bf16.mxu0 0
    %258 = vmatpush2.bf16.msra.mxu0 0
    %259 = vmatprep.subr.bf16.mxu0 0
    %260 = vmatpush2.bf16.msra.mxu0 0
    %261 = vmatprep.subr.bf16.mxu0 0
    %262 = vmatpush2.bf16.msra.mxu0 0
    %263 = vmatprep.mubr.bf16.mxu0 0
    %264 = vmatmul.mubr.bf16.gmra.mxu0 %v229
    %v265 = vpop.f32.mrf.mxu0
    %v266 = vadd.f32 %v199, %v265
    %v267 = vpop.f32.mrf.mxu0
    %v268 = vadd.f32 %v203, %v267
    %v269 = vpop.f32.mrf.mxu0
    %v270 = vpop.f32.mrf.mxu0
    %271 = vdwg.mxu0
    %272 = vmatprep.subr.bf16.mxu0 0
    %273 = vmatpush1.bf16.msra.mxu0 0
    %274 = vmatprep.subr.bf16.mxu0 0
    %275 = vmatpush1.bf16.msra.mxu0 0
    %276 = vmatprep.subr.bf16.mxu0 0
    %277 = vmatpush1.bf16.msra.mxu0 0
    %278 = vmatprep.subr.bf16.mxu0 0
    %279 = vmatpush1.bf16.msra.mxu0 0
    %280 = vmatprep.subr.bf16.mxu0 0
    %281 = vmatpush1.bf16.msra.mxu0 0
    %282 = vmatprep.subr.bf16.mxu0 0
    %283 = vmatpush1.bf16.msra.mxu0 0
    %284 = vmatprep.subr.bf16.mxu0 0
    %285 = vmatpush1.bf16.msra.mxu0 0
    %286 = vmatprep.subr.bf16.mxu0 0
    %287 = vmatpush1.bf16.msra.mxu0 %v223
    %288 = vmatprep.subr.bf16.mxu0 0
    %289 = vmatpush2.bf16.msra.mxu0 0
    %290 = vmatprep.subr.bf16.mxu0 0
    %291 = vmatpush2.bf16.msra.mxu0 0
    %292 = vmatprep.subr.bf16.mxu0 0
    %293 = vmatpush2.bf16.msra.mxu0 0
    %294 = vmatprep.subr.bf16.mxu0 0
    %295 = vmatpush2.bf16.msra.mxu0 0
    %296 = vmatprep.subr.bf16.mxu0 0
    %297 = vmatpush2.bf16.msra.mxu0 0
    %298 = vmatprep.subr.bf16.mxu0 0
    %299 = vmatpush2.bf16.msra.mxu0 0
    %300 = vmatprep.subr.bf16.mxu0 0
    %301 = vmatpush2.bf16.msra.mxu0 0
    %302 = vmatprep.subr.bf16.mxu0 0
    %303 = vmatpush2.bf16.msra.mxu0 0
    %304 = vmatprep.mubr.bf16.mxu0 0
    %305 = vmatmul.mubr.bf16.gmra.mxu0 %v229
    %v306 = vpop.f32.mrf.mxu0
    %v307 = vadd.f32 %v207, %v306
    %v308 = vpop.f32.mrf.mxu0
    %v309 = vpop.f32.mrf.mxu0
    %v310 = vpop.f32.mrf.mxu0
    %311 = vdwg.mxu0
    %v313 = vlaneseq
    %v314 = vshrl.u32 %v313, 7
    %v315 = vsub.s32 0, %v314
    %v316 = vrot.slane %v101, %v315
    %v317 = vlaneseq
    %v318 = vshrl.u32 %v317, 7
    %v319 = vsub.s32 1, %v318
    %v320 = vrot.slane %v101, %v319
    %v321 = vlaneseq
    %v322 = vshrl.u32 %v321, 7
    %v323 = vsub.s32 2, %v322
    %v324 = vrot.slane %v101, %v323
    %v360 = vunpack.c.l.b16 %v49
    %v361 = vunpack.c.h.b16 %v49
    %v362 = vunpack.c.l.b16 %v50
    %v363 = vunpack.c.l.b16 %v51
    %v364 = vunpack.c.h.b16 %v51
    %v365 = vunpack.c.l.b16 %v52
    %v366 = vunpack.c.l.b16 %v53
    %v367 = vunpack.c.h.b16 %v53
    %v368 = vunpack.c.l.b16 %v54
    %v369 = vunpack.c.l.b16 %v55
    %v370 = vunpack.c.h.b16 %v55
    %v371 = vunpack.c.l.b16 %v56
    %v372 = vunpack.c.l.b16 %v57
    %v373 = vunpack.c.h.b16 %v57
    %v374 = vunpack.c.l.b16 %v58
    %v375 = vunpack.c.l.b16 %v59
    %v376 = vunpack.c.h.b16 %v59
    %v377 = vunpack.c.l.b16 %v60
    %v378 = vunpack.c.l.b16 %v61
    %v379 = vunpack.c.h.b16 %v61
    %v380 = vunpack.c.l.b16 %v62
    %v381 = vunpack.c.l.b16 %v63
    %v382 = vunpack.c.h.b16 %v63
    %v383 = vunpack.c.l.b16 %v64
    %v384 = vunpack.c.l.b16 %v65
    %v385 = vunpack.c.h.b16 %v65
    %v386 = vunpack.c.l.b16 %v66
    %v387 = vunpack.c.l.b16 %v67
    %v388 = vunpack.c.h.b16 %v67
    %v389 = vunpack.c.l.b16 %v68
    %v390 = vunpack.c.l.b16 %v69
    %v391 = vunpack.c.h.b16 %v69
    %v392 = vunpack.c.l.b16 %v70
    %v393 = vunpack.c.l.b16 %v71
    %v394 = vunpack.c.h.b16 %v71
    %v395 = vunpack.c.l.b16 %v72
    %v396 = vunpack.c.l.b16 %v73
    %v397 = vunpack.c.h.b16 %v73
    %v398 = vunpack.c.l.b16 %v74
    %v399 = vunpack.c.l.b16 %v75
    %v400 = vunpack.c.h.b16 %v75
    %v401 = vunpack.c.l.b16 %v76
    %v402 = vunpack.c.l.b16 %v77
    %v403 = vunpack.c.h.b16 %v77
    %v404 = vunpack.c.l.b16 %v78
    %v405 = vunpack.c.l.b16 %v79
    %v406 = vunpack.c.h.b16 %v79
    %v407 = vunpack.c.l.b16 %v80
    %v408 = vpack.c.b16 %v363, %v360
    %v409 = vpack.c.b16 %v364, %v361
    %v410 = vpack.c.b16 %v365, %v362
    %v411 = vpack.c.b16 %v369, %v366
    %v412 = vpack.c.b16 %v370, %v367
    %v413 = vpack.c.b16 %v371, %v368
    %v414 = vpack.c.b16 %v375, %v372
    %v415 = vpack.c.b16 %v376, %v373
    %v416 = vpack.c.b16 %v377, %v374
    %v417 = vpack.c.b16 %v381, %v378
    %v418 = vpack.c.b16 %v382, %v379
    %v419 = vpack.c.b16 %v383, %v380
    %v420 = vpack.c.b16 %v387, %v384
    %v421 = vpack.c.b16 %v388, %v385
    %v422 = vpack.c.b16 %v389, %v386
    %v423 = vpack.c.b16 %v393, %v390
    %v424 = vpack.c.b16 %v394, %v391
    %v425 = vpack.c.b16 %v395, %v392
    %v426 = vpack.c.b16 %v399, %v396
    %v427 = vpack.c.b16 %v400, %v397
    %v428 = vpack.c.b16 %v401, %v398
    %v429 = vpack.c.b16 %v405, %v402
    %v430 = vpack.c.b16 %v406, %v403
    %v431 = vpack.c.b16 %v407, %v404
    %456 = vmatprep.subr.bf16.mxu0 %v430
    %457 = vmatpush1.bf16.msra.mxu0 %v429
    %458 = vmatprep.subr.bf16.mxu0 %v427
    %459 = vmatpush1.bf16.msra.mxu0 %v426
    %460 = vmatprep.subr.bf16.mxu0 %v424
    %461 = vmatpush1.bf16.msra.mxu0 %v423
    %462 = vmatprep.subr.bf16.mxu0 %v421
    %463 = vmatpush1.bf16.msra.mxu0 %v420
    %464 = vmatprep.subr.bf16.mxu0 %v418
    %465 = vmatpush1.bf16.msra.mxu0 %v417
    %466 = vmatprep.subr.bf16.mxu0 %v415
    %467 = vmatpush1.bf16.msra.mxu0 %v414
    %468 = vmatprep.subr.bf16.mxu0 %v412
    %469 = vmatpush1.bf16.msra.mxu0 %v411
    %470 = vmatprep.subr.bf16.mxu0 %v409
    %471 = vmatpush1.bf16.msra.mxu0 %v408
    %472 = vmatprep.subr.bf16.mxu0 0
    %473 = vmatpush2.bf16.msra.mxu0 0
    %474 = vmatprep.subr.bf16.mxu0 0
    %475 = vmatpush2.bf16.msra.mxu0 0
    %476 = vmatprep.subr.bf16.mxu0 0
    %477 = vmatpush2.bf16.msra.mxu0 0
    %478 = vmatprep.subr.bf16.mxu0 0
    %479 = vmatpush2.bf16.msra.mxu0 0
    %480 = vmatprep.subr.bf16.mxu0 0
    %481 = vmatpush2.bf16.msra.mxu0 0
    %482 = vmatprep.subr.bf16.mxu0 0
    %483 = vmatpush2.bf16.msra.mxu0 0
    %484 = vmatprep.subr.bf16.mxu0 0
    %485 = vmatpush2.bf16.msra.mxu0 0
    %486 = vmatprep.subr.bf16.mxu0 0
    %487 = vmatpush2.bf16.msra.mxu0 0
    %488 = vmatprep.mubr.bf16.mxu0 0
    %489 = vmatmul.mubr.bf16.gmra.mxu0 0
    %v490 = vpop.f32.mrf.mxu0
    %v491 = vadd.f32 %v316, %v490
    %v492 = vpop.f32.mrf.mxu0
    %v493 = vadd.f32 %v320, %v492
    %v494 = vpop.f32.mrf.mxu0
    %v495 = vpop.f32.mrf.mxu0
    %496 = vdwg.mxu0
    %497 = vmatprep.subr.bf16.mxu0 0
    %498 = vmatpush1.bf16.msra.mxu0 %v431
    %499 = vmatprep.subr.bf16.mxu0 0
    %500 = vmatpush1.bf16.msra.mxu0 %v428
    %501 = vmatprep.subr.bf16.mxu0 0
    %502 = vmatpush1.bf16.msra.mxu0 %v425
    %503 = vmatprep.subr.bf16.mxu0 0
    %504 = vmatpush1.bf16.msra.mxu0 %v422
    %505 = vmatprep.subr.bf16.mxu0 0
    %506 = vmatpush1.bf16.msra.mxu0 %v419
    %507 = vmatprep.subr.bf16.mxu0 0
    %508 = vmatpush1.bf16.msra.mxu0 %v416
    %509 = vmatprep.subr.bf16.mxu0 0
    %510 = vmatpush1.bf16.msra.mxu0 %v413
    %511 = vmatprep.subr.bf16.mxu0 0
    %512 = vmatpush1.bf16.msra.mxu0 %v410
    %513 = vmatprep.subr.bf16.mxu0 0
    %514 = vmatpush2.bf16.msra.mxu0 0
    %515 = vmatprep.subr.bf16.mxu0 0
    %516 = vmatpush2.bf16.msra.mxu0 0
    %517 = vmatprep.subr.bf16.mxu0 0
    %518 = vmatpush2.bf16.msra.mxu0 0
    %519 = vmatprep.subr.bf16.mxu0 0
    %520 = vmatpush2.bf16.msra.mxu0 0
    %521 = vmatprep.subr.bf16.mxu0 0
    %522 = vmatpush2.bf16.msra.mxu0 0
    %523 = vmatprep.subr.bf16.mxu0 0
    %524 = vmatpush2.bf16.msra.mxu0 0
    %525 = vmatprep.subr.bf16.mxu0 0
    %526 = vmatpush2.bf16.msra.mxu0 0
    %527 = vmatprep.subr.bf16.mxu0 0
    %528 = vmatpush2.bf16.msra.mxu0 0
    %529 = vmatprep.mubr.bf16.mxu0 0
    %530 = vmatmul.mubr.bf16.gmra.mxu0 0
    %v531 = vpop.f32.mrf.mxu0
    %v532 = vadd.f32 %v324, %v531
    %v533 = vpop.f32.mrf.mxu0
    %v534 = vpop.f32.mrf.mxu0
    %v535 = vpop.f32.mrf.mxu0
    %536 = vdwg.mxu0
    %v537 = vadd.f32 %v266, %v491
    %v538 = vxor.u32 %v537, 2147483648
    %v539 = vmul.f32 %v538, 1.442695
    %v540 = vpow.pop %v539
    %v541 = vadd.f32 %v540, 1.0
    %v542 = vrcp.pop %v541
    %v543 = vmul.f32 1.0, %v542
    %v544 = vadd.f32 %v268, %v493
    %v545 = vxor.u32 %v544, 2147483648
    %v546 = vmul.f32 %v545, 1.442695
    %v547 = vpow.pop %v546
    %v548 = vadd.f32 %v547, 1.0
    %v549 = vrcp.pop %v548
    %v550 = vmul.f32 1.0, %v549
    %v551 = vmul.f32 %v543, %v532
    %v552 = vadd.f32 %v307, %v551
    %v553 = vtanh.pop %v552
    %v554 = vsub.f32 1.0, %v550
    %v555 = vmul.f32 %v554, %v553
    %v556 = vmul.f32 %v550, 0.0
    %v557 = vadd.f32 %v555, %v556
    %v558 = vpack.c.bf16 %v557, %v557
    %v575 = vunpack.c.l.b16 %v81
    %v576 = vunpack.c.l.b16 %v82
    %v577 = vunpack.c.l.b16 %v83
    %v578 = vunpack.c.l.b16 %v84
    %v579 = vunpack.c.l.b16 %v85
    %v580 = vunpack.c.l.b16 %v86
    %v581 = vunpack.c.l.b16 %v87
    %v582 = vunpack.c.l.b16 %v88
    %v583 = vunpack.c.l.b16 %v89
    %v584 = vunpack.c.l.b16 %v90
    %v585 = vunpack.c.l.b16 %v91
    %v586 = vunpack.c.l.b16 %v92
    %v587 = vunpack.c.l.b16 %v93
    %v588 = vunpack.c.l.b16 %v94
    %v589 = vunpack.c.l.b16 %v95
    %v590 = vunpack.c.l.b16 %v96
    %v591 = vpack.c.b16 %v576, %v575
    %v592 = vpack.c.b16 %v578, %v577
    %v593 = vpack.c.b16 %v580, %v579
    %v594 = vpack.c.b16 %v582, %v581
    %v595 = vpack.c.b16 %v584, %v583
    %v596 = vpack.c.b16 %v586, %v585
    %v597 = vpack.c.b16 %v588, %v587
    %v598 = vpack.c.b16 %v590, %v589
    %607 = vmatprep.subr.bf16.mxu0 0
    %608 = vmatpush1.bf16.msra.mxu0 %v598
    %609 = vmatprep.subr.bf16.mxu0 0
    %610 = vmatpush1.bf16.msra.mxu0 %v597
    %611 = vmatprep.subr.bf16.mxu0 0
    %612 = vmatpush1.bf16.msra.mxu0 %v596
    %613 = vmatprep.subr.bf16.mxu0 0
    %614 = vmatpush1.bf16.msra.mxu0 %v595
    %615 = vmatprep.subr.bf16.mxu0 0
    %616 = vmatpush1.bf16.msra.mxu0 %v594
    %617 = vmatprep.subr.bf16.mxu0 0
    %618 = vmatpush1.bf16.msra.mxu0 %v593
    %619 = vmatprep.subr.bf16.mxu0 0
    %620 = vmatpush1.bf16.msra.mxu0 %v592
    %621 = vmatprep.subr.bf16.mxu0 0
    %622 = vmatpush1.bf16.msra.mxu0 %v591
    %623 = vmatprep.subr.bf16.mxu0 0
    %624 = vmatpush2.bf16.msra.mxu0 0
    %625 = vmatprep.subr.bf16.mxu0 0
    %626 = vmatpush2.bf16.msra.mxu0 0
    %627 = vmatprep.subr.bf16.mxu0 0
    %628 = vmatpush2.bf16.msra.mxu0 0
    %629 = vmatprep.subr.bf16.mxu0 0
    %630 = vmatpush2.bf16.msra.mxu0 0
    %631 = vmatprep.subr.bf16.mxu0 0
    %632 = vmatpush2.bf16.msra.mxu0 0
    %633 = vmatprep.subr.bf16.mxu0 0
    %634 = vmatpush2.bf16.msra.mxu0 0
    %635 = vmatprep.subr.bf16.mxu0 0
    %636 = vmatpush2.bf16.msra.mxu0 0
    %637 = vmatprep.subr.bf16.mxu0 0
    %638 = vmatpush2.bf16.msra.mxu0 0
    %639 = vmatprep.mubr.bf16.mxu0 0
    %640 = vmatmul.mubr.bf16.gmra.mxu0 %v558
    %v641 = vpop.f32.mrf.mxu0
    %v642 = vadd.f32 %v102, %v641
    %v643 = vpop.f32.mrf.mxu0
    %v644 = vpop.f32.mrf.mxu0
    %v645 = vpop.f32.mrf.mxu0
    %646 = vdwg.mxu0
    %647 = vst [vmem:[%s3] sm:$0xff] %v642
    // Predicated region
    $region18: #{_lambda_.1} parent=1 // pred_check
      _
    $region19: #{_lambda_.1} parent=1 // pred_check_branch
      %649 = sbr.rel (0) target = $region21
    $region20: #{_lambda_.1} parent=1 // pred_region
      _
    $region21: #{_lambda_.1} parent=1 // pred_fallthru
      _
    // Predicated region
    $region22: #{_lambda_.1} parent=1 // pred_check
      _
    $region23: #{_lambda_.1} parent=1 // pred_check_branch
      %651 = sbr.rel (0) target = $region25
    $region24: #{_lambda_.1} parent=1 // pred_region
      _
    $region25: #{_lambda_.1} parent=1 // pred_fallthru
      _
    %652 = vsyncpa [#allocation3], 1

</llo_original>
